<compile_context>
chip_gen: v5e
topology: v5e:2x2
jax: 0.10.0
libtpu: 0.0.40
codegen_flags: <defaults>
</compile_context>

<pallas_src>
import functools

import jax
import jax.numpy as jnp
from jax import lax
from jax.experimental import pallas as pl
from jax.experimental.pallas import tpu as pltpu


# --------------------------------------------------------------------------- #
# Kernels
# --------------------------------------------------------------------------- #

def _kernel_fullk(x_ref, w_ref, b_ref, o_ref, *, block_n, precision):
    """Full-K contraction per grid step: y = tanh(x @ W_t + b + x[:, cols])."""
    j = pl.program_id(0)                       # N-tile index (outer grid axis)
    x = x_ref[...]                             # (block_b, n_in), compute dtype
    y = jnp.dot(x, w_ref[...],                 # MXU matmul, f32 accumulation
                preferred_element_type=jnp.float32, precision=precision)

    # Residual columns for this N tile (n_in == n_out).
    if block_n == x_ref.shape[1]:              # single N tile -> whole row
        resid = x
    else:                                      # block_n is a multiple of 128
        start = pl.multiple_of(j * block_n, block_n)
        resid = x_ref[:, pl.ds(start, block_n)]

    y = y + b_ref[...].astype(jnp.float32) + resid.astype(jnp.float32)
    o_ref[...] = jnp.tanh(y).astype(o_ref.dtype)      # EUP tanh, f32 epilogue


def _kernel_ksplit(x_ref, w_ref, b_ref, xr_ref, o_ref, acc_ref, *, precision):
    """K-tiled contraction with an f32 VMEM accumulator (K is innermost)."""
    k = pl.program_id(2)

    @pl.when(k == 0)
    def _():
        acc_ref[...] = jnp.zeros_like(acc_ref)

    acc_ref[...] += jnp.dot(x_ref[...], w_ref[...],
                            preferred_element_type=jnp.float32,
                            precision=precision)

    @pl.when(k == pl.num_programs(2) - 1)
    def _():
        y = (acc_ref[...] + b_ref[...].astype(jnp.float32)
             + xr_ref[...].astype(jnp.float32))
        o_ref[...] = jnp.tanh(y).astype(o_ref.dtype)


# --------------------------------------------------------------------------- #
# Tile / VMEM helpers
# --------------------------------------------------------------------------- #

def _vmem_capacity_bytes():
    try:
        cap = int(getattr(pltpu.get_tpu_info(), "vmem_capacity_bytes", 0))
        if cap > 0:
            return cap
    except Exception:
        pass
    return 64 << 20                      # conservative (v7x-sized) fallback


def _choose_tile(dim, target, align):
    """Largest multiple of `align` <= target that divides dim, else full dim."""
    if dim <= target:
        return dim
    t = (target // align) * align
    while t >= align:
        if dim % t == 0:
            return t
        t -= align
    return dim


def _footprint_bytes(bb, bn, bk, n_in, it_x, it_w, it_out):
    """Double-buffered VMEM tile footprint for the chosen blocks."""
    tiles = bb * bk * it_x + bk * bn * it_w + bn * 4 + bb * bn * it_out
    total = 2 * tiles                                   # double buffering
    if bk < n_in:                                       # K-split extras
        total += 2 * bb * bn * it_x                     # residual side stream
        total += bb * bn * 4                            # f32 accumulator
    return total


# --------------------------------------------------------------------------- #
# Wrapper
# --------------------------------------------------------------------------- #

@functools.partial(
    jax.jit,
    static_argnames=("block_b", "block_n", "block_k", "compute_dtype",
                     "out_dtype"))
def resid_linear(x, weight, bias, *, block_b=None, block_n=None, block_k=None,
                 compute_dtype=jnp.bfloat16, out_dtype=None):
    """tanh(x @ weight.T + bias + x).

    x: (..., n_in); weight: (n_out, n_in) in PyTorch layout; bias: (n_out,).
    Requires n_in == n_out (implied by the residual add in the module).
    """
    n_in = x.shape[-1]
    lead = x.shape[:-1]
    x2 = x.reshape(-1, n_in)
    B = x2.shape[0]
    n_out, n_in_w = weight.shape
    assert n_in == n_in_w and n_in == n_out, "residual add requires n_in == n_out"
    assert bias.shape == (n_out,)

    out_dtype = out_dtype or x.dtype
    it_x = jnp.dtype(compute_dtype).itemsize
    it_w = it_x
    it_out = jnp.dtype(out_dtype).itemsize
    sub = max(8, 32 // it_x)             # sublane granularity for compute dtype

    # ---- generation-aware VMEM budget (v5e/v6e 128 MiB, v7x 64 MiB) ------- #
    cap = _vmem_capacity_bytes()
    limit_cap = max(min(cap - (12 << 20), 112 << 20), 32 << 20)
    budget = max(limit_cap - (8 << 20), 16 << 20)     # slack for Mosaic scratch

    # ------------------------------ tile defaults -------------------------- #
    if block_b is None:
        block_b = _choose_tile(B, 512, sub)
    if block_n is None:
        # Single-N-tile fast path when the (double-buffered) weight fits.
        if 2 * n_in * n_out * it_w <= budget // 2:
            block_n = n_out
        else:
            block_n = _choose_tile(n_out, 1024 if budget >= (64 << 20) else 512,
                                   128)
    if block_k is None:
        bb, bn, bk = block_b, block_n, n_in
        # Shrink toward a K-split first, then batch, then N, until slabs fit.
        while _footprint_bytes(bb, bn, bk, n_in, it_x, it_w, it_out) > budget:
            if (bk >= 1024 and bk % 2 == 0 and (bk // 2) % 128 == 0
                    and n_in % (bk // 2) == 0):
                bk //= 2
            elif (bb > sub and bb % 2 == 0 and (bb // 2) % sub == 0
                  and B % (bb // 2) == 0):
                bb //= 2
            elif (bn >= 256 and bn % 2 == 0 and (bn // 2) % 128 == 0
                  and n_out % (bn // 2) == 0):
                bn //= 2
            else:
                break
        block_b, block_n, block_k = bb, bn, bk

    assert B % block_b == 0 and (block_b == B or block_b % sub == 0), \
        f"block_b={block_b} must divide B={B} and be a multiple of {sub}"
    assert n_out % block_n == 0 and (block_n == n_out or block_n % 128 == 0), \
        f"block_n={block_n} must divide n_out={n_out} and be lane-aligned"
    assert n_in % block_k == 0 and (block_k == n_in or block_k % 128 == 0), \
        f"block_k={block_k} must divide n_in={n_in} and be lane-aligned"

    # ---- one-time wrapper-side prep: cast x, transpose + cast W ----------- #
    x_c = x2.astype(compute_dtype)
    w_t = weight.T.astype(compute_dtype)          # (n_in, n_out)
    b2d = bias.astype(jnp.float32).reshape(1, n_out)

    precision = (lax.Precision.HIGHEST
                 if jnp.dtype(compute_dtype) == jnp.dtype(jnp.float32) else None)

    n_tiles = n_out // block_n
    b_tiles = B // block_b
    k_tiles = n_in // block_k

    footprint = _footprint_bytes(block_b, block_n, block_k, n_in,
                                 it_x, it_w, it_out)
    vmem_limit = int(min(limit_cap, max(footprint + (8 << 20), 24 << 20)))

    if k_tiles == 1:
        # Grid (N tiles, batch tiles): batch innermost so the weight tile
        # (a function of j only) stays resident across all batch steps.
        kernel = functools.partial(_kernel_fullk, block_n=block_n,
                                   precision=precision)
        grid = (n_tiles, b_tiles)
        # On v7x split the N axis across cores (each core sees half of W).
        dims = ("parallel", "arbitrary") if n_tiles > 1 else ("parallel",
                                                              "parallel")
        in_specs = [
            pl.BlockSpec((block_b, n_in), lambda j, i: (i, 0)),      # x
            pl.BlockSpec((n_in, block_n), lambda j, i: (0, j)),      # W^T tile
            pl.BlockSpec((1, block_n), lambda j, i: (0, j)),         # bias
        ]
        out_spec = pl.BlockSpec((block_b, block_n), lambda j, i: (i, j))
        scratch = []
        args = (x_c, w_t, b2d)
    else:
        # Grid (N tiles, batch tiles, K tiles): K innermost reduction with an
        # f32 VMEM accumulator; residual columns streamed as a side input.
        kernel = functools.partial(_kernel_ksplit, precision=precision)
        grid = (n_tiles, b_tiles, k_tiles)
        dims = ("parallel", "parallel", "arbitrary")
        in_specs = [
            pl.BlockSpec((block_b, block_k), lambda j, i, k: (i, k)),   # x slab
            pl.BlockSpec((block_k, block_n), lambda j, i, k: (k, j)),   # W^T
            pl.BlockSpec((1, block_n), lambda j, i, k: (0, j)),         # bias
            pl.BlockSpec((block_b, block_n), lambda j, i, k: (i, j)),   # resid
        ]
        out_spec = pl.BlockSpec((block_b, block_n), lambda j, i, k: (i, j))
        scratch = [pltpu.VMEM((block_b, block_n), jnp.float32)]
        args = (x_c, w_t, b2d, x_c)

    out = pl.pallas_call(
        kernel,
        out_shape=jax.ShapeDtypeStruct((B, n_out), out_dtype),
        grid_spec=pltpu.PrefetchScalarGridSpec(
            num_scalar_prefetch=0,
            grid=grid,
            in_specs=in_specs,
            out_specs=out_spec,
            scratch_shapes=scratch,
        ),
        compiler_params=pltpu.CompilerParams(
            dimension_semantics=dims,
            vmem_limit_bytes=vmem_limit,
        ),
    )(*args)
    return out.reshape(lead + (n_out,))


# --------------------------------------------------------------------------- #
# Reference + test harness
# --------------------------------------------------------------------------- #

def reference(x, weight, bias):
    # Pure-JAX reference mirroring PyTorch: tanh(x @ W.T + b + x).
    # HIGHEST precision so the f32 reference is genuinely f32-accurate.
    y = jnp.dot(x, weight.T, precision=lax.Precision.HIGHEST)
    return jnp.tanh(y + bias + x)


def _make_inputs(key, batch, hidden):
    k_x, k_w, k_b = jax.random.split(key, 3)
    bound = 1.0 / (hidden ** 0.5)   # nn.Linear default init range
    weight = jax.random.uniform(k_w, (hidden, hidden), jnp.float32, -bound, bound)
    bias = jax.random.uniform(k_b, (hidden,), jnp.float32, -bound, bound)
    x = jax.random.normal(k_x, (batch, hidden), jnp.float32)
    return x, weight, bias


if __name__ == "__main__":
    k1, k2 = jax.random.split(jax.random.PRNGKey(0))

    # Case 1: tiny module-scale shapes (single grid step, full-dim blocks).
    x, w, b = _make_inputs(k1, 8, 32)
    ref = reference(x, w, b)
    out_f32 = jax.block_until_ready(
        resid_linear(x, w, b, compute_dtype=jnp.float32))
    assert out_f32.shape == ref.shape
    assert jnp.allclose(out_f32, ref, atol=1e-5, rtol=1e-5), "f32 mismatch (1)"
    out_bf16 = jax.block_until_ready(resid_linear(x, w, b))   # default bf16 path
    assert jnp.allclose(out_bf16, ref, atol=5e-2, rtol=5e-2), "bf16 mismatch (1)"

    # Case 2: B=64, H=256.
    x2, w2, b2 = _make_inputs(k2, 64, 256)
    ref2 = reference(x2, w2, b2)

    # (a) auto tiles, default bf16: single-N-tile weight-resident fast path.
    out2a = jax.block_until_ready(resid_linear(x2, w2, b2))
    assert jnp.allclose(out2a, ref2, atol=5e-2, rtol=5e-2), "bf16 mismatch (2a)"

    # (b) full-K kernel with N + batch tiling (grid (2,4)), dynamic residual
    #     slice, true-f32 (HIGHEST) matmul.
    out2b = jax.block_until_ready(
        resid_linear(x2, w2, b2, block_b=16, block_n=128,
                     compute_dtype=jnp.float32))
    assert jnp.allclose(out2b, ref2, atol=2e-5, rtol=1e-5), "f32 mismatch (2b)"

    # (c) K-split kernel (grid (2,4,2)) with f32 VMEM accumulator, f32 inputs.
    out2c = jax.block_until_ready(
        resid_linear(x2, w2, b2, block_b=16, block_n=128, block_k=128,
                     compute_dtype=jnp.float32))
    assert jnp.allclose(out2c, ref2, atol=2e-5, rtol=1e-5), "f32 mismatch (2c)"

    # (d) K-split kernel in the default bf16 path (grid (2,2,2)).
    out2d = jax.block_until_ready(
        resid_linear(x2, w2, b2, block_b=32, block_n=128, block_k=128))
    assert jnp.allclose(out2d, ref2, atol=5e-2, rtol=5e-2), "bf16 mismatch (2d)"

    print("KERNEL_OK")
</pallas_src>

<mosaic_0001>
module attributes {stable_mosaic.version = 11 : i64} {
  func.func @_kernel_fullk(%arg0: i32, %arg1: i32, %arg2: memref<8x32xf32, #tpu.memory_space<vmem>>, %arg3: memref<32x32xf32, #tpu.memory_space<vmem>>, %arg4: memref<1x32xf32, #tpu.memory_space<vmem>>, %arg5: memref<8x32xf32, #tpu.memory_space<vmem>>) attributes {dimension_semantics = [#tpu.dimension_semantics<parallel>, #tpu.dimension_semantics<parallel>], iteration_bounds = array<i64: 1, 1>, scalar_prefetch = 0 : i64, scratch_operands = 0 : i64, tpu.core_type = #tpu.core_type<tc>, window_params = [{transform_indices = @transform_0, window_bounds = array<i64: 8, 32>}, {transform_indices = @transform_1, window_bounds = array<i64: 32, 32>}, {transform_indices = @transform_2, window_bounds = array<i64: 1, 32>}, {transform_indices = @transform_3, window_bounds = array<i64: 8, 32>}]} {
    %c0 = arith.constant 0 : index
    %c0_0 = arith.constant 0 : index
    %0 = vector.load %arg2[%c0, %c0_0] : memref<8x32xf32, #tpu.memory_space<vmem>>, vector<8x32xf32>
    %c0_1 = arith.constant 0 : index
    %c0_2 = arith.constant 0 : index
    %1 = vector.load %arg3[%c0_1, %c0_2] : memref<32x32xf32, #tpu.memory_space<vmem>>, vector<32x32xf32>
    %cst = arith.constant dense<0.000000e+00> : vector<8x32xf32>
    %2 = tpu.matmul %0, %1, %cst {dimension_numbers = #tpu.dot_dimension_numbers<[1], [0], [0], [1], [0, 0, 1, 1], [], []>, precision = #tpu.contract_precision<fp32>} : vector<8x32xf32>, vector<32x32xf32>, vector<8x32xf32> -> vector<8x32xf32>
    %c0_3 = arith.constant 0 : index
    %c0_4 = arith.constant 0 : index
    %3 = vector.load %arg4[%c0_3, %c0_4] : memref<1x32xf32, #tpu.memory_space<vmem>>, vector<1x32xf32>
    %4 = vector.broadcast %3 : vector<1x32xf32> to vector<8x32xf32>
    %5 = arith.addf %2, %4 : vector<8x32xf32>
    %6 = arith.addf %5, %0 : vector<8x32xf32>
    %7 = math.tanh %6 : vector<8x32xf32>
    %c0_5 = arith.constant 0 : index
    %c0_6 = arith.constant 0 : index
    %8 = vector.load %arg5[%c0_5, %c0_6] : memref<8x32xf32, #tpu.memory_space<vmem>>, vector<8x32xf32>
    tpu.vector_store %arg5[%c0_5, %c0_6], %7 {strides = array<i32>} : memref<8x32xf32, #tpu.memory_space<vmem>>, vector<8x32xf32>,
    return
  }
  func.func @transform_0(%arg0: i32, %arg1: i32) -> (i32, i32) {
    %c0_i32 = arith.constant 0 : i32
    %c0_i32_0 = arith.constant 0 : i32
    return %arg1, %c0_i32 : i32, i32
  }
  func.func @transform_1(%arg0: i32, %arg1: i32) -> (i32, i32) {
    %c0_i32 = arith.constant 0 : i32
    %c0_i32_0 = arith.constant 0 : i32
    return %c0_i32, %arg0 : i32, i32
  }
  func.func @transform_2(%arg0: i32, %arg1: i32) -> (i32, i32) {
    %c0_i32 = arith.constant 0 : i32
    %c0_i32_0 = arith.constant 0 : i32
    return %c0_i32, %arg0 : i32, i32
  }
  func.func @transform_3(%arg0: i32, %arg1: i32) -> (i32, i32) {
    %c0_i32 = arith.constant 0 : i32
    return %arg1, %arg0 : i32, i32
  }
}

</mosaic_0001>

<llo_original>
// kernel: resid_linear.1
$region0: #{resid_linear.1}
  #allocation0 [shape = 'u32[]', space=smem, size = 0x4, offset = 0x4, fixed_abs, tag = 'smem constant byte address 0x4 - core index']
  #allocation1 [shape = 'u32[72,128]{1,0:T(1,128)}', space=vmem, size = 0x9000, scoped, tag = 'internal scratch']
  %s0 = inlined_call_operand.vmem [shape: f32[8,32], index: 0, kind: input, shape index: {}]
  %s1 = inlined_call_operand.vmem [shape: f32[32,32], index: 1, kind: input, shape index: {}]
  %s2 = inlined_call_operand.vmem [shape: f32[1,32], index: 2, kind: input, shape index: {}]
  %s3 = inlined_call_operand.hbm [shape: f32[8,32], index: 3, kind: output, shape index: {}]
  %s4 = sld [smem:[#allocation0]]
  $region22: #{resid_linear.1} parent=0
    _
  %s6 = ssub.s32 1, %s4
  %s7 = scalar_select 0, %s6, %s4
  $region1: #{resid_linear.1} parent=0
    #allocation2 [shape = 'u8[4096]{0}', space=vmem, size = 0x1000, scoped, tag = 'output window, operand 0, single buffered']
    #allocation3 [shape = 's32[1]{0}', space=sflag, size = 0x4, scoped, tag = 'scoped memory for resid_linear.1']
    %8 = vsyncpa [#allocation3], 0
    // Predicated region
    $region2: #{resid_linear.1} parent=1 // pred_check
      _
    $region3: #{resid_linear.1} parent=1 // pred_check_branch
      %10 = sbr.rel (0) target = $region5
    $region4: #{resid_linear.1} parent=1 // pred_region
      _
    $region5: #{resid_linear.1} parent=1 // pred_fallthru
      _
    // Predicated region
    $region6: #{resid_linear.1} parent=1 // pred_check
      _
    $region7: #{resid_linear.1} parent=1 // pred_check_branch
      %12 = sbr.rel (0) target = $region9
    $region8: #{resid_linear.1} parent=1 // pred_region
      _
    $region9: #{resid_linear.1} parent=1 // pred_fallthru
      _
    // Predicated region
    $region10: #{resid_linear.1} parent=1 // pred_check
      _
    $region11: #{resid_linear.1} parent=1 // pred_check_branch
      %14 = sbr.rel (0) target = $region13
    $region12: #{resid_linear.1} parent=1 // pred_region
      _
    $region13: #{resid_linear.1} parent=1 // pred_fallthru
      _
    %v15 = vld [vmem:[%s0] sm:$0xff]
    %v16 = vld [vmem:[%s1] sm:$0xff]
    %v17 = vld [vmem:[%s1 + $0x8] sm:$0xff]
    %v18 = vld [vmem:[%s1 + $0x10] sm:$0xff]
    %v19 = vld [vmem:[%s1 + $0x18] sm:$0xff]
    %v20 = vld [vmem:[%s2] sm:$0x1]
    %v22 = vperm.slane %v20, 0
    %vm24 = vcmask 261120
    %v26 = vsel %vm24, %v15, 0
    %28 = vmatpush.msra.mxu0 0.0
    %29 = vmatpush.msra.mxu0 0.0
    %30 = vmatpush.msra.mxu0 0.0
    %31 = vmatpush.msra.mxu0 0.0
    %32 = vmatpush.msra.mxu0 0.0
    %33 = vmatpush.msra.mxu0 0.0
    %34 = vmatpush.msra.mxu0 0.0
    %35 = vmatpush.msra.mxu0 0.0
    %36 = vmatpush.msra.mxu0 0.0
    %37 = vmatpush.msra.mxu0 0.0
    %38 = vmatpush.msra.mxu0 0.0
    %39 = vmatpush.msra.mxu0 0.0
    %v40 = vand.u32 %v19, 4294901760
    %41 = vmatpush.msra.mxu0 %v40
    %v42 = vand.u32 %v18, 4294901760
    %43 = vmatpush.msra.mxu0 %v42
    %v44 = vand.u32 %v17, 4294901760
    %45 = vmatpush.msra.mxu0 %v44
    %v46 = vand.u32 %v16, 4294901760
    %47 = vmatpush.msra.mxu0 %v46
    %v48 = vand.u32 %v26, 4294901760
    %v49 = vsub.f32 %v26, %v48
    %v50 = vand.u32 %v49, 4294901760
    %v51 = vsub.f32 %v49, %v50
    %v52 = vand.u32 %v51, 4294901760
    %53 = vmatmul.f32.gmra.mxu0 %v52
    %v54 = vpop.f32.mrf.mxu0
    %v55 = vadd.f32 %v22, %v54
    %56 = vdwg.mxu0
    %57 = vmatpush.msra.mxu0 0.0
    %58 = vmatpush.msra.mxu0 0.0
    %59 = vmatpush.msra.mxu0 0.0
    %60 = vmatpush.msra.mxu0 0.0
    %61 = vmatpush.msra.mxu0 0.0
    %62 = vmatpush.msra.mxu0 0.0
    %63 = vmatpush.msra.mxu0 0.0
    %64 = vmatpush.msra.mxu0 0.0
    %65 = vmatpush.msra.mxu0 0.0
    %66 = vmatpush.msra.mxu0 0.0
    %67 = vmatpush.msra.mxu0 0.0
    %68 = vmatpush.msra.mxu0 0.0
    %v69 = vand.u32 %v19, 4294901760
    %v70 = vsub.f32 %v19, %v69
    %v71 = vand.u32 %v70, 4294901760
    %v72 = vsub.f32 %v70, %v71
    %v73 = vand.u32 %v72, 4294901760
    %74 = vmatpush.msra.mxu0 %v73
    %v75 = vand.u32 %v18, 4294901760
    %v76 = vsub.f32 %v18, %v75
    %v77 = vand.u32 %v76, 4294901760
    %v78 = vsub.f32 %v76, %v77
    %v79 = vand.u32 %v78, 4294901760
    %80 = vmatpush.msra.mxu0 %v79
    %v81 = vand.u32 %v17, 4294901760
    %v82 = vsub.f32 %v17, %v81
    %v83 = vand.u32 %v82, 4294901760
    %v84 = vsub.f32 %v82, %v83
    %v85 = vand.u32 %v84, 4294901760
    %86 = vmatpush.msra.mxu0 %v85
    %v87 = vand.u32 %v16, 4294901760
    %v88 = vsub.f32 %v16, %v87
    %v89 = vand.u32 %v88, 4294901760
    %v90 = vsub.f32 %v88, %v89
    %v91 = vand.u32 %v90, 4294901760
    %92 = vmatpush.msra.mxu0 %v91
    %v93 = vand.u32 %v26, 4294901760
    %94 = vmatmul.f32.gmra.mxu0 %v93
    %v95 = vpop.f32.mrf.mxu0
    %v96 = vadd.f32 %v55, %v95
    %97 = vdwg.mxu0
    %98 = vmatpush.msra.mxu0 0.0
    %99 = vmatpush.msra.mxu0 0.0
    %100 = vmatpush.msra.mxu0 0.0
    %101 = vmatpush.msra.mxu0 0.0
    %102 = vmatpush.msra.mxu0 0.0
    %103 = vmatpush.msra.mxu0 0.0
    %104 = vmatpush.msra.mxu0 0.0
    %105 = vmatpush.msra.mxu0 0.0
    %106 = vmatpush.msra.mxu0 0.0
    %107 = vmatpush.msra.mxu0 0.0
    %108 = vmatpush.msra.mxu0 0.0
    %109 = vmatpush.msra.mxu0 0.0
    %v110 = vand.u32 %v19, 4294901760
    %v111 = vsub.f32 %v19, %v110
    %112 = vmatpush.msra.mxu0 %v111
    %v113 = vand.u32 %v18, 4294901760
    %v114 = vsub.f32 %v18, %v113
    %115 = vmatpush.msra.mxu0 %v114
    %v116 = vand.u32 %v17, 4294901760
    %v117 = vsub.f32 %v17, %v116
    %118 = vmatpush.msra.mxu0 %v117
    %v119 = vand.u32 %v16, 4294901760
    %v120 = vsub.f32 %v16, %v119
    %121 = vmatpush.msra.mxu0 %v120
    %v122 = vand.u32 %v26, 4294901760
    %v123 = vsub.f32 %v26, %v122
    %124 = vmatmul.f32.gmra.mxu0 %v123
    %v125 = vpop.f32.mrf.mxu0
    %v126 = vadd.f32 %v96, %v125
    %127 = vdwg.mxu0
    %128 = vmatpush.msra.mxu0 0.0
    %129 = vmatpush.msra.mxu0 0.0
    %130 = vmatpush.msra.mxu0 0.0
    %131 = vmatpush.msra.mxu0 0.0
    %132 = vmatpush.msra.mxu0 0.0
    %133 = vmatpush.msra.mxu0 0.0
    %134 = vmatpush.msra.mxu0 0.0
    %135 = vmatpush.msra.mxu0 0.0
    %136 = vmatpush.msra.mxu0 0.0
    %137 = vmatpush.msra.mxu0 0.0
    %138 = vmatpush.msra.mxu0 0.0
    %139 = vmatpush.msra.mxu0 0.0
    %v140 = vand.u32 %v19, 4294901760
    %141 = vmatpush.msra.mxu0 %v140
    %v142 = vand.u32 %v18, 4294901760
    %143 = vmatpush.msra.mxu0 %v142
    %v144 = vand.u32 %v17, 4294901760
    %145 = vmatpush.msra.mxu0 %v144
    %v146 = vand.u32 %v16, 4294901760
    %147 = vmatpush.msra.mxu0 %v146
    %v148 = vand.u32 %v26, 4294901760
    %v149 = vsub.f32 %v26, %v148
    %v150 = vand.u32 %v149, 4294901760
    %151 = vmatmul.f32.gmra.mxu0 %v150
    %v152 = vpop.f32.mrf.mxu0
    %v153 = vadd.f32 %v126, %v152
    %154 = vdwg.mxu0
    %155 = vmatpush.msra.mxu0 0.0
    %156 = vmatpush.msra.mxu0 0.0
    %157 = vmatpush.msra.mxu0 0.0
    %158 = vmatpush.msra.mxu0 0.0
    %159 = vmatpush.msra.mxu0 0.0
    %160 = vmatpush.msra.mxu0 0.0
    %161 = vmatpush.msra.mxu0 0.0
    %162 = vmatpush.msra.mxu0 0.0
    %163 = vmatpush.msra.mxu0 0.0
    %164 = vmatpush.msra.mxu0 0.0
    %165 = vmatpush.msra.mxu0 0.0
    %166 = vmatpush.msra.mxu0 0.0
    %v167 = vand.u32 %v19, 4294901760
    %v168 = vsub.f32 %v19, %v167
    %v169 = vand.u32 %v168, 4294901760
    %170 = vmatpush.msra.mxu0 %v169
    %v171 = vand.u32 %v18, 4294901760
    %v172 = vsub.f32 %v18, %v171
    %v173 = vand.u32 %v172, 4294901760
    %174 = vmatpush.msra.mxu0 %v173
    %v175 = vand.u32 %v17, 4294901760
    %v176 = vsub.f32 %v17, %v175
    %v177 = vand.u32 %v176, 4294901760
    %178 = vmatpush.msra.mxu0 %v177
    %v179 = vand.u32 %v16, 4294901760
    %v180 = vsub.f32 %v16, %v179
    %v181 = vand.u32 %v180, 4294901760
    %182 = vmatpush.msra.mxu0 %v181
    %v183 = vand.u32 %v26, 4294901760
    %184 = vmatmul.f32.gmra.mxu0 %v183
    %v185 = vpop.f32.mrf.mxu0
    %v186 = vadd.f32 %v153, %v185
    %187 = vdwg.mxu0
    %188 = vmatpush.msra.mxu0 0.0
    %189 = vmatpush.msra.mxu0 0.0
    %190 = vmatpush.msra.mxu0 0.0
    %191 = vmatpush.msra.mxu0 0.0
    %192 = vmatpush.msra.mxu0 0.0
    %193 = vmatpush.msra.mxu0 0.0
    %194 = vmatpush.msra.mxu0 0.0
    %195 = vmatpush.msra.mxu0 0.0
    %196 = vmatpush.msra.mxu0 0.0
    %197 = vmatpush.msra.mxu0 0.0
    %198 = vmatpush.msra.mxu0 0.0
    %199 = vmatpush.msra.mxu0 0.0
    %v200 = vand.u32 %v19, 4294901760
    %201 = vmatpush.msra.mxu0 %v200
    %v202 = vand.u32 %v18, 4294901760
    %203 = vmatpush.msra.mxu0 %v202
    %v204 = vand.u32 %v17, 4294901760
    %205 = vmatpush.msra.mxu0 %v204
    %v206 = vand.u32 %v16, 4294901760
    %207 = vmatpush.msra.mxu0 %v206
    %v208 = vand.u32 %v26, 4294901760
    %209 = vmatmul.f32.gmra.mxu0 %v208
    %v210 = vpop.f32.mrf.mxu0
    %v211 = vadd.f32 %v186, %v210
    %212 = vdwg.mxu0
    %v213 = vadd.f32 %v211, %v15
    %v214 = vtanh.pop %v213
    %215 = vst.msk [vmem:[#allocation2] sm:$0xff] %vm24, %v214
    // Predicated region
    $region14: #{resid_linear.1} parent=1 // pred_check
      _
    $region15: #{resid_linear.1} parent=1 // pred_check_branch
      %217 = sbr.rel (0) target = $region17
    $region16: #{resid_linear.1} parent=1 // pred_region
      %219 = vsyncadd [#allocation3], 0
      %s221 = sshll.u32 [#allocation2], 4
      %s222 = int_to_ptr.vmem [resolvable:$true] %s221
      %s223 = sshll.u32 %s3, 4
      %s224 = int_to_ptr.hbm [resolvable:$true] %s223
      %226 = dma.vmem_to_hbm [thread:$0]  %s222, 128, %s224, [#allocation3]
    $region17: #{resid_linear.1} parent=1 // pred_fallthru
      _
    // Predicated region
    $region18: #{resid_linear.1} parent=1 // pred_check
      _
    $region19: #{resid_linear.1} parent=1 // pred_check_branch
      %228 = sbr.rel (0) target = $region21
    $region20: #{resid_linear.1} parent=1 // pred_region
      %230 = dma.done [#allocation3], 128
    $region21: #{resid_linear.1} parent=1 // pred_fallthru
      _
    %231 = vsyncpa [#allocation3], 1

</llo_original>
